<compile_context>
chip_gen: v5e
topology: v5e:2x2
jax: 0.10.0
libtpu: 0.0.40
codegen_flags: <defaults>
</compile_context>

<pallas_src>
import functools

import jax
import jax.numpy as jnp
from jax import lax
from jax.experimental import pallas as pl
from jax.experimental.pallas import tpu as pltpu

_LANE = 128
_SUBLANE = 8


def _round_up(x, m):
    return ((x + m - 1) // m) * m


def _vmem_config():
    """Return (vmem_limit_bytes, tile_budget_bytes), generation-aware."""
    phys = None
    try:
        info = pltpu.get_tpu_info()
        phys = getattr(info, "vmem_capacity_bytes", None)
    except Exception:
        phys = None
    if phys is None:
        phys = 64 * 1024 * 1024  # assume the smallest (v7x per-core) VMEM
    if phys >= 96 * 1024 * 1024:           # v5e / v6e: 128 MiB physical VMEM
        return 64 * 1024 * 1024, 28 * 1024 * 1024
    else:                                   # v7x: 64 MiB physical VMEM
        return 44 * 1024 * 1024, 18 * 1024 * 1024


# ---------------------------------------------------------------------------
# Kernels
# ---------------------------------------------------------------------------
def _bn_train_single_pass_kernel(x_ref, rm_ref, rv_ref,
                                 out_ref, new_rm_ref, new_rv_ref, *, eps):
    """Full batch resident per feature tile: one pass computes stats + output."""
    xf = x_ref[...].astype(jnp.float32)                           # (N, TF)
    mean = jnp.mean(xf, axis=0, keepdims=True)                    # (1, TF)
    centered = xf - mean
    var = jnp.mean(centered * centered, axis=0, keepdims=True)    # biased variance

    inv = 1.0 / (jnp.sqrt(var) + eps)                             # eps on std, not var
    out_ref[...] = (centered * inv).astype(out_ref.dtype)

    rm = rm_ref[...].astype(jnp.float32)
    rv = rv_ref[...].astype(jnp.float32)
    new_rm_ref[...] = ((1.0 - eps) * rm + eps * mean).astype(new_rm_ref.dtype)
    new_rv_ref[...] = ((1.0 - eps) * rv + eps * var).astype(new_rv_ref.dtype)


def _bn_stats_kernel(x_ref, mean_ref, var_ref, sum_sc, sq_sc, *, n_rows, tn):
    """Phase 1 of the tall-N path: accumulate sum / sum(x^2) across N tiles."""
    n_idx = pl.program_id(1)

    @pl.when(n_idx == 0)
    def _():
        sum_sc[...] = jnp.zeros_like(sum_sc)
        sq_sc[...] = jnp.zeros_like(sq_sc)

    xf = x_ref[...].astype(jnp.float32)                           # (TN, TF)
    row = n_idx * tn + lax.broadcasted_iota(jnp.int32, xf.shape, 0)
    xf = jnp.where(row < n_rows, xf, 0.0)                         # mask ragged last N tile
    sum_sc[...] += jnp.sum(xf, axis=0, keepdims=True)
    sq_sc[...] += jnp.sum(xf * xf, axis=0, keepdims=True)

    @pl.when(n_idx == pl.num_programs(1) - 1)
    def _():
        inv_n = 1.0 / float(n_rows)
        mean = sum_sc[...] * inv_n
        var = jnp.maximum(sq_sc[...] * inv_n - mean * mean, 0.0)  # biased variance
        mean_ref[...] = mean
        var_ref[...] = var


def _bn_apply_kernel(x_ref, mean_ref, var_ref, out_ref, *, eps):
    """Normalize with given per-feature stats (eval mode, or phase 2 of tall-N path)."""
    xf = x_ref[...].astype(jnp.float32)
    mean = mean_ref[...].astype(jnp.float32)
    std = jnp.sqrt(var_ref[...].astype(jnp.float32))
    out_ref[...] = ((xf - mean) * (1.0 / (std + eps))).astype(out_ref.dtype)


# ---------------------------------------------------------------------------
# Tile selection
# ---------------------------------------------------------------------------
def _choose_2d_tiles(n, f, itemsize, budget):
    """(tn, tf) for the elementwise normalize/eval kernel.

    Per-element VMEM bytes ~= 4*itemsize (double-buffered in + out tiles) + 8 (f32 temps).
    """
    f_aligned = _round_up(f, _LANE)
    per_elem = 4 * itemsize + 8
    # Prefer the full batch per tile (fewest grid steps) when it fits.
    max_tf_full_n = (budget // (per_elem * max(n, 1))) // _LANE * _LANE
    if max_tf_full_n >= _LANE:
        tf = min(max_tf_full_n, f_aligned)
        if f_aligned >= 2 * _LANE:
            tf = min(tf, _round_up(f_aligned // 2, _LANE))  # >=2 tiles -> v7x megacore
        return n, tf
    tf = min(f_aligned, 4 * _LANE)                          # 512 lanes: high-roofline regime
    tn = (budget // (per_elem * tf)) // _SUBLANE * _SUBLANE
    if tn < _SUBLANE:
        tn = _SUBLANE
    if tn >= n:
        tn = n
    return tn, tf


# ---------------------------------------------------------------------------
# pallas_call wrappers
# ---------------------------------------------------------------------------
def _apply(x, mean, var, eps, budget, vmem_limit):
    n, f = x.shape
    itemsize = jnp.dtype(x.dtype).itemsize
    tn, tf = _choose_2d_tiles(n, f, itemsize, budget)
    grid = (pl.cdiv(f, tf), pl.cdiv(n, tn))
    x_spec = pl.BlockSpec((tn, tf), lambda j, i: (i, j))
    s_spec = pl.BlockSpec((1, tf), lambda j, i: (0, j))
    return pl.pallas_call(
        functools.partial(_bn_apply_kernel, eps=float(eps)),
        out_shape=jax.ShapeDtypeStruct((n, f), x.dtype),
        grid=grid,
        in_specs=[x_spec, s_spec, s_spec],
        out_specs=x_spec,
        compiler_params=pltpu.CompilerParams(
            dimension_semantics=("parallel", "parallel"),
            vmem_limit_bytes=vmem_limit),
        cost_estimate=pl.CostEstimate(
            flops=int(3 * n * f), transcendentals=int(f),
            bytes_accessed=int(2 * n * f * itemsize)),
    )(x, mean, var)


def _batch_stats(x, budget, vmem_limit):
    """Tall-N path, phase 1: per-feature mean / biased variance via an N-tiled reduction."""
    n, f = x.shape
    itemsize = jnp.dtype(x.dtype).itemsize
    f_aligned = _round_up(f, _LANE)
    tf = min(f_aligned, 4 * _LANE)
    per_elem = 2 * itemsize + 8          # double-buffered x in + f32 masked temp
    tn = (budget // (per_elem * tf)) // _SUBLANE * _SUBLANE
    if tn < _SUBLANE:
        tn = _SUBLANE
    if tn >= n:
        tn = n
    grid = (pl.cdiv(f, tf), pl.cdiv(n, tn))
    x_spec = pl.BlockSpec((tn, tf), lambda j, i: (i, j))
    s_spec = pl.BlockSpec((1, tf), lambda j, i: (0, j))
    mean, var = pl.pallas_call(
        functools.partial(_bn_stats_kernel, n_rows=n, tn=tn),
        out_shape=(jax.ShapeDtypeStruct((1, f), jnp.float32),
                   jax.ShapeDtypeStruct((1, f), jnp.float32)),
        grid=grid,
        in_specs=[x_spec],
        out_specs=(s_spec, s_spec),
        scratch_shapes=[pltpu.VMEM((1, tf), jnp.float32),
                        pltpu.VMEM((1, tf), jnp.float32)],
        compiler_params=pltpu.CompilerParams(
            dimension_semantics=("parallel", "arbitrary"),
            vmem_limit_bytes=vmem_limit),
        cost_estimate=pl.CostEstimate(
            flops=int(4 * n * f), transcendentals=0,
            bytes_accessed=int(n * f * itemsize)),
    )(x)
    return mean, var


def custom_batch_norm(x, running_mean, running_var, *, eps=0.1, training=True):
    """x: (N, F); running_mean/var: (1, F).

    training=True  -> returns (out, new_running_mean, new_running_var)
    training=False -> returns out
    """
    N, F = x.shape
    assert running_mean.shape == (1, F) and running_var.shape == (1, F)

    itemsize = jnp.dtype(x.dtype).itemsize
    vmem_limit, budget = _vmem_config()

    if not training:
        return _apply(x, running_mean, running_var, eps, budget, vmem_limit)

    # ---- training ----
    f_aligned = _round_up(F, _LANE)
    # Single-pass path needs the full batch per (N, TF) tile, plus f32 temporaries:
    # per-lane bytes = N * (4*itemsize [double-buffered x in + out] + 8 [f32 temps]).
    per_lane = N * (4 * itemsize + 8)
    max_tf = (budget // per_lane) // _LANE * _LANE if per_lane > 0 else 0

    if max_tf >= _LANE:
        tf = min(max_tf, f_aligned)
        if f_aligned >= 2 * _LANE:
            tf = min(tf, _round_up(f_aligned // 2, _LANE))   # >=2 tiles -> v7x megacore
        num_f = pl.cdiv(F, tf)
        x_spec = pl.BlockSpec((N, tf), lambda j: (0, j))
        s_spec = pl.BlockSpec((1, tf), lambda j: (0, j))
        out, new_rm, new_rv = pl.pallas_call(
            functools.partial(_bn_train_single_pass_kernel, eps=float(eps)),
            out_shape=(jax.ShapeDtypeStruct((N, F), x.dtype),
                       jax.ShapeDtypeStruct((1, F), running_mean.dtype),
                       jax.ShapeDtypeStruct((1, F), running_var.dtype)),
            grid=(num_f,),
            in_specs=[x_spec, s_spec, s_spec],
            out_specs=(x_spec, s_spec, s_spec),
            compiler_params=pltpu.CompilerParams(
                dimension_semantics=("parallel",),
                vmem_limit_bytes=vmem_limit),
            cost_estimate=pl.CostEstimate(
                flops=int(8 * N * F), transcendentals=int(F),
                bytes_accessed=int(2 * N * F * itemsize)),
        )(x, running_mean, running_var)
        return out, new_rm, new_rv

    # Tall-N fallback: two-phase (stats reduction, then re-stream & normalize).
    mean, var = _batch_stats(x, budget, vmem_limit)
    out = _apply(x, mean, var, eps, budget, vmem_limit)
    new_rm = ((1.0 - eps) * running_mean.astype(jnp.float32) + eps * mean
              ).astype(running_mean.dtype)
    new_rv = ((1.0 - eps) * running_var.astype(jnp.float32) + eps * var
              ).astype(running_var.dtype)
    return out, new_rm, new_rv


# ---------------------------------------------------------------------------
# Demo / correctness check
# ---------------------------------------------------------------------------
if __name__ == "__main__":
    key = jax.random.PRNGKey(0)
    N, F = 16, 32
    eps = 0.1

    x = jax.random.normal(key, (N, F), dtype=jnp.float32)
    # Buffers initialized exactly as the module's __init__: zeros / ones of shape (1, F).
    running_mean = jnp.zeros((1, F), dtype=jnp.float32)
    running_var = jnp.ones((1, F), dtype=jnp.float32)

    # ---- training-mode forward (single-pass path) ----
    out, new_rm, new_rv = custom_batch_norm(
        x, running_mean, running_var, eps=eps, training=True)
    jax.block_until_ready((out, new_rm, new_rv))

    mean_ref = jnp.mean(x, axis=0, keepdims=True)
    var_ref = jnp.mean((x - mean_ref) ** 2, axis=0, keepdims=True)
    out_ref = (x - mean_ref) / (jnp.sqrt(var_ref) + eps)
    rm_ref = (1 - eps) * running_mean + eps * mean_ref
    rv_ref = (1 - eps) * running_var + eps * var_ref
    assert jnp.allclose(out, out_ref, atol=1e-5, rtol=1e-5)
    assert jnp.allclose(new_rm, rm_ref, atol=1e-6)
    assert jnp.allclose(new_rv, rv_ref, atol=1e-6)

    # ---- eval-mode forward using the updated running stats ----
    out_eval = custom_batch_norm(x, new_rm, new_rv, eps=eps, training=False)
    jax.block_until_ready(out_eval)
    out_eval_ref = (x - rm_ref) / (jnp.sqrt(rv_ref) + eps)
    assert jnp.allclose(out_eval, out_eval_ref, atol=1e-5, rtol=1e-5)

    # ---- exercise the tall-N two-phase path at a small shape (tiny forced budget;
    #      N=20 not a multiple of 8 -> exercises ragged-row masking in the stats kernel) ----
    N2 = 20
    x2 = jax.random.normal(jax.random.PRNGKey(1), (N2, F), dtype=jnp.float32)
    vmem_limit, _ = _vmem_config()
    tiny_budget = 8 * 1024
    mean2, var2 = _batch_stats(x2, tiny_budget, vmem_limit)
    out2 = _apply(x2, mean2, var2, eps, tiny_budget, vmem_limit)
    jax.block_until_ready((mean2, var2, out2))
    mean2_ref = jnp.mean(x2, axis=0, keepdims=True)
    var2_ref = jnp.mean((x2 - mean2_ref) ** 2, axis=0, keepdims=True)
    out2_ref = (x2 - mean2_ref) / (jnp.sqrt(var2_ref) + eps)
    assert jnp.allclose(mean2, mean2_ref, atol=1e-4, rtol=1e-4)
    assert jnp.allclose(var2, var2_ref, atol=1e-4, rtol=1e-4)
    assert jnp.allclose(out2, out2_ref, atol=1e-4, rtol=1e-4)

    print("KERNEL_OK")
</pallas_src>

<mosaic_0001>
module attributes {stable_mosaic.version = 11 : i64} {
  func.func @_bn_train_single_pass_kernel(%arg0: i32, %arg1: memref<16x128xf32, #tpu.memory_space<vmem>>, %arg2: memref<1x128xf32, #tpu.memory_space<vmem>>, %arg3: memref<1x128xf32, #tpu.memory_space<vmem>>, %arg4: memref<16x128xf32, #tpu.memory_space<vmem>>, %arg5: memref<1x128xf32, #tpu.memory_space<vmem>>, %arg6: memref<1x128xf32, #tpu.memory_space<vmem>>) attributes {dimension_semantics = [#tpu.dimension_semantics<parallel>], iteration_bounds = array<i64: 1>, scalar_prefetch = 0 : i64, scratch_operands = 0 : i64, tpu.core_type = #tpu.core_type<tc>, window_params = [{transform_indices = @transform_0, window_bounds = array<i64: 16, 128>}, {transform_indices = @transform_1, window_bounds = array<i64: 1, 128>}, {transform_indices = @transform_2, window_bounds = array<i64: 1, 128>}, {transform_indices = @transform_3, window_bounds = array<i64: 16, 128>}, {transform_indices = @transform_4, window_bounds = array<i64: 1, 128>}, {transform_indices = @transform_5, window_bounds = array<i64: 1, 128>}]} {
    %c0 = arith.constant 0 : index
    %c0_0 = arith.constant 0 : index
    %0 = vector.load %arg1[%c0, %c0_0] : memref<16x128xf32, #tpu.memory_space<vmem>>, vector<16x128xf32>
    %cst = arith.constant dense<0.000000e+00> : vector<128xf32>
    %1 = vector.multi_reduction <add>, %0, %cst [0] : vector<16x128xf32> to vector<128xf32>
    %2 = vector.shape_cast %1 : vector<128xf32> to vector<1x128xf32>
    %cst_1 = arith.constant 1.600000e+01 : f32
    %3 = vector.broadcast %cst_1 : f32 to vector<1x128xf32>
    %4 = arith.divf %2, %3 : vector<1x128xf32>
    %5 = vector.broadcast %4 : vector<1x128xf32> to vector<16x128xf32>
    %6 = arith.subf %0, %5 : vector<16x128xf32>
    %7 = arith.mulf %6, %6 : vector<16x128xf32>
    %cst_2 = arith.constant dense<0.000000e+00> : vector<128xf32>
    %8 = vector.multi_reduction <add>, %7, %cst_2 [0] : vector<16x128xf32> to vector<128xf32>
    %9 = vector.shape_cast %8 : vector<128xf32> to vector<1x128xf32>
    %cst_3 = arith.constant 1.600000e+01 : f32
    %10 = vector.broadcast %cst_3 : f32 to vector<1x128xf32>
    %11 = arith.divf %9, %10 : vector<1x128xf32>
    %12 = math.sqrt %11 : vector<1x128xf32>
    %cst_4 = arith.constant 1.000000e-01 : f32
    %13 = vector.broadcast %cst_4 : f32 to vector<1x128xf32>
    %14 = arith.addf %12, %13 : vector<1x128xf32>
    %cst_5 = arith.constant 1.000000e+00 : f32
    %15 = vector.broadcast %cst_5 : f32 to vector<1x128xf32>
    %16 = arith.divf %15, %14 : vector<1x128xf32>
    %17 = vector.broadcast %16 : vector<1x128xf32> to vector<16x128xf32>
    %18 = arith.mulf %6, %17 : vector<16x128xf32>
    %c0_6 = arith.constant 0 : index
    %c0_7 = arith.constant 0 : index
    %19 = vector.load %arg4[%c0_6, %c0_7] : memref<16x128xf32, #tpu.memory_space<vmem>>, vector<16x128xf32>
    tpu.vector_store %arg4[%c0_6, %c0_7], %18 {strides = array<i32>} : memref<16x128xf32, #tpu.memory_space<vmem>>, vector<16x128xf32>,
    %c0_8 = arith.constant 0 : index
    %c0_9 = arith.constant 0 : index
    %20 = vector.load %arg2[%c0_8, %c0_9] : memref<1x128xf32, #tpu.memory_space<vmem>>, vector<1x128xf32>
    %c0_10 = arith.constant 0 : index
    %c0_11 = arith.constant 0 : index
    %21 = vector.load %arg3[%c0_10, %c0_11] : memref<1x128xf32, #tpu.memory_space<vmem>>, vector<1x128xf32>
    %cst_12 = arith.constant 0.899999976 : f32
    %22 = vector.broadcast %cst_12 : f32 to vector<1x128xf32>
    %23 = arith.mulf %22, %20 : vector<1x128xf32>
    %cst_13 = arith.constant 1.000000e-01 : f32
    %24 = vector.broadcast %cst_13 : f32 to vector<1x128xf32>
    %25 = arith.mulf %24, %4 : vector<1x128xf32>
    %26 = arith.addf %23, %25 : vector<1x128xf32>
    %c0_14 = arith.constant 0 : index
    %c0_15 = arith.constant 0 : index
    %27 = vector.load %arg5[%c0_14, %c0_15] : memref<1x128xf32, #tpu.memory_space<vmem>>, vector<1x128xf32>
    tpu.vector_store %arg5[%c0_14, %c0_15], %26 {strides = array<i32>} : memref<1x128xf32, #tpu.memory_space<vmem>>, vector<1x128xf32>,
    %cst_16 = arith.constant 0.899999976 : f32
    %28 = vector.broadcast %cst_16 : f32 to vector<1x128xf32>
    %29 = arith.mulf %28, %21 : vector<1x128xf32>
    %cst_17 = arith.constant 1.000000e-01 : f32
    %30 = vector.broadcast %cst_17 : f32 to vector<1x128xf32>
    %31 = arith.mulf %30, %11 : vector<1x128xf32>
    %32 = arith.addf %29, %31 : vector<1x128xf32>
    %c0_18 = arith.constant 0 : index
    %c0_19 = arith.constant 0 : index
    %33 = vector.load %arg6[%c0_18, %c0_19] : memref<1x128xf32, #tpu.memory_space<vmem>>, vector<1x128xf32>
    tpu.vector_store %arg6[%c0_18, %c0_19], %32 {strides = array<i32>} : memref<1x128xf32, #tpu.memory_space<vmem>>, vector<1x128xf32>,
    return
  }
  func.func @transform_0(%arg0: i32) -> (i32, i32) {
    %c0_i32 = arith.constant 0 : i32
    %c0_i32_0 = arith.constant 0 : i32
    return %c0_i32, %arg0 : i32, i32
  }
  func.func @transform_1(%arg0: i32) -> (i32, i32) {
    %c0_i32 = arith.constant 0 : i32
    %c0_i32_0 = arith.constant 0 : i32
    return %c0_i32, %arg0 : i32, i32
  }
  func.func @transform_2(%arg0: i32) -> (i32, i32) {
    %c0_i32 = arith.constant 0 : i32
    %c0_i32_0 = arith.constant 0 : i32
    return %c0_i32, %arg0 : i32, i32
  }
  func.func @transform_3(%arg0: i32) -> (i32, i32) {
    %c0_i32 = arith.constant 0 : i32
    %c0_i32_0 = arith.constant 0 : i32
    return %c0_i32, %arg0 : i32, i32
  }
  func.func @transform_4(%arg0: i32) -> (i32, i32) {
    %c0_i32 = arith.constant 0 : i32
    %c0_i32_0 = arith.constant 0 : i32
    return %c0_i32, %arg0 : i32, i32
  }
  func.func @transform_5(%arg0: i32) -> (i32, i32) {
    %c0_i32 = arith.constant 0 : i32
    %c0_i32_0 = arith.constant 0 : i32
    return %c0_i32, %arg0 : i32, i32
  }
}

</mosaic_0001>

<llo_original>
// kernel: tpu_custom_call.1
$region0: #{tpu_custom_call.1}
  #allocation0 [shape = 'u32[]', space=smem, size = 0x4, offset = 0x4, fixed_abs, tag = 'smem constant byte address 0x4 - core index']
  #allocation1 [shape = 'u32[72,128]{1,0:T(1,128)}', space=vmem, size = 0x9000, scoped, tag = 'internal scratch']
  %s0 = inlined_call_operand.hbm [shape: f32[16,32], index: 0, kind: input, shape index: {}]
  %s1 = inlined_call_operand.hbm [shape: f32[1,32], index: 1, kind: input, shape index: {}]
  %s2 = inlined_call_operand.vmem [shape: f32[1,32], index: 2, kind: input, shape index: {}]
  %s3 = inlined_call_operand.hbm [shape: f32[16,32], index: 3, kind: output, shape index: {0}]
  %s4 = inlined_call_operand.hbm [shape: f32[1,32], index: 4, kind: output, shape index: {1}]
  %s5 = inlined_call_operand.hbm [shape: f32[1,32], index: 5, kind: output, shape index: {2}]
  %6 = xla_tuple %s3, %s4, %s5
  %s7 = sld [smem:[#allocation0]]
  $region46: #{tpu_custom_call.1} parent=0
    _
  %s9 = ssub.s32 1, %s7
  %s10 = scalar_select 0, %s9, %s7
  $region1: #{tpu_custom_call.1} parent=0
    #allocation2 [shape = 'u8[8192]{0}', space=vmem, size = 0x2000, scoped, tag = 'input window, operand 0, single buffered']
    #allocation3 [shape = 's32[1]{0}', space=sflag, size = 0x4, scoped, tag = 'scoped memory for tpu_custom_call.1']
    #allocation4 [shape = 's32[1]{0}', space=sflag, size = 0x4, scoped, tag = 'scoped memory for tpu_custom_call.1']
    #allocation5 [shape = 'u8[512]{0}', space=vmem, size = 0x400, scoped, tag = 'input window, operand 1, single buffered']
    #allocation6 [shape = 's32[1]{0}', space=sflag, size = 0x4, scoped, tag = 'scoped memory for tpu_custom_call.1']
    #allocation7 [shape = 'u8[8192]{0}', space=vmem, size = 0x2000, scoped, tag = 'output window, operand 0, single buffered']
    #allocation8 [shape = 'u8[512]{0}', space=vmem, size = 0x400, scoped, tag = 'output window, operand 1, single buffered']
    #allocation9 [shape = 's32[1]{0}', space=sflag, size = 0x4, scoped, tag = 'scoped memory for tpu_custom_call.1']
    #allocation10 [shape = 'u8[512]{0}', space=vmem, size = 0x400, scoped, tag = 'output window, operand 2, single buffered']
    %11 = vsyncpa [#allocation3], 0
    %12 = vsyncpa [#allocation6], 0
    %13 = vsyncpa [#allocation4], 0
    %14 = vsyncpa [#allocation9], 0
    // Predicated region
    $region2: #{tpu_custom_call.1} parent=1 // pred_check
      _
    $region3: #{tpu_custom_call.1} parent=1 // pred_check_branch
      %16 = sbr.rel (0) target = $region5
    $region4: #{tpu_custom_call.1} parent=1 // pred_region
      %18 = vsyncadd [#allocation3], 0
      %s19 = sshll.u32 %s0, 4
      %s20 = int_to_ptr.hbm [resolvable:$true] %s19
      %s21 = sshll.u32 [#allocation2], 4
      %s22 = int_to_ptr.vmem [resolvable:$true] %s21
      %27 = dma.hbm_to_vmem [thread:$0]  %s20, 256, %s22, [#allocation3], 128, 128, 8
    $region5: #{tpu_custom_call.1} parent=1 // pred_fallthru
      _
    // Predicated region
    $region6: #{tpu_custom_call.1} parent=1 // pred_check
      _
    $region7: #{tpu_custom_call.1} parent=1 // pred_check_branch
      %29 = sbr.rel (0) target = $region9
    $region8: #{tpu_custom_call.1} parent=1 // pred_region
      %31 = vsyncadd [#allocation6], 0
      %s33 = sshll.u32 %s1, 4
      %s34 = int_to_ptr.hbm [resolvable:$true] %s33
      %s35 = sshll.u32 [#allocation5], 4
      %s36 = int_to_ptr.vmem [resolvable:$true] %s35
      %38 = dma.hbm_to_vmem [thread:$0]  %s34, 16, %s36, [#allocation6]
    $region9: #{tpu_custom_call.1} parent=1 // pred_fallthru
      _
    // Predicated region
    $region10: #{tpu_custom_call.1} parent=1 // pred_check
      _
    $region11: #{tpu_custom_call.1} parent=1 // pred_check_branch
      %40 = sbr.rel (0) target = $region13
    $region12: #{tpu_custom_call.1} parent=1 // pred_region
      _
    $region13: #{tpu_custom_call.1} parent=1 // pred_fallthru
      _
    // Predicated region
    $region14: #{tpu_custom_call.1} parent=1 // pred_check
      _
    $region15: #{tpu_custom_call.1} parent=1 // pred_check_branch
      %42 = sbr.rel (0) target = $region17
    $region16: #{tpu_custom_call.1} parent=1 // pred_region
      %44 = dma.done [#allocation3], 256
    $region17: #{tpu_custom_call.1} parent=1 // pred_fallthru
      _
    // Predicated region
    $region18: #{tpu_custom_call.1} parent=1 // pred_check
      _
    $region19: #{tpu_custom_call.1} parent=1 // pred_check_branch
      %46 = sbr.rel (0) target = $region21
    $region20: #{tpu_custom_call.1} parent=1 // pred_region
      %48 = dma.done [#allocation6], 16
    $region21: #{tpu_custom_call.1} parent=1 // pred_fallthru
      _
    %v49 = vld [vmem:[#allocation2] sm:$0xff]
    %v50 = vld [vmem:[#allocation2 + $0x8] sm:$0xff]
    %v51 = vadd.f32 %v49, %v50
    %v52 = vrot.slane %v51, 4
    %v53 = vadd.f32 %v51, %v52
    %v54 = vrot.slane %v53, 2
    %v55 = vadd.f32 %v53, %v54
    %v56 = vrot.slane %v55, 1
    %v57 = vadd.f32 %v55, %v56
    %v58 = vrcp.pop 16.0
    %v59 = vmul.f32 16.0, %v58
    %v60 = vsub.f32 1.0, %v59
    %v61 = vmul.f32 %v58, %v60
    %v62 = vadd.f32 %v58, %v61
    %vm63 = vweird.f32 %v58
    %v64 = vsel %vm63, %v58, %v62
    %v65 = vmul.f32 %v57, %v64
    %v66 = vsub.f32 %v49, %v65
    %v67 = vsub.f32 %v50, %v65
    %v68 = vmul.f32 %v66, %v66
    %v69 = vmul.f32 %v67, %v67
    %v70 = vadd.f32 %v68, %v69
    %v71 = vrot.slane %v70, 4
    %v72 = vadd.f32 %v70, %v71
    %v73 = vrot.slane %v72, 2
    %v74 = vadd.f32 %v72, %v73
    %v75 = vrot.slane %v74, 1
    %v76 = vadd.f32 %v74, %v75
    %v77 = vmul.f32 %v76, %v64
    %v78 = vrsqrt.pop %v77
    %v79 = vmul.f32 %v78, %v77
    %v80 = vmul.f32 %v79, %v78
    %v81 = vmul.f32 0.5, %v80
    %v82 = vsub.f32 1.5, %v81
    %v83 = vmul.f32 %v78, %v82
    %v84 = vmul.f32 %v77, %v83
    %vm85 = vcmp.eq.f32.partialorder %v77, inf
    %v86 = vsel %vm85, %v77, %v84
    %vm87 = vcmp.eq.f32.partialorder %v77, 0.0
    %v88 = vand.u32 %v77, 2147483648
    %v89 = vsel %vm87, %v88, %v86
    %v90 = vadd.f32 %v89, 0.1
    %v91 = vrcp.pop %v90
    %v92 = vmul.f32 %v90, %v91
    %v93 = vsub.f32 1.0, %v92
    %v94 = vmul.f32 %v91, %v93
    %v95 = vadd.f32 %v91, %v94
    %vm96 = vweird.f32 %v90
    %vm97 = vweird.f32 %v91
    %vm98 = vmor %vm96, %vm97
    %v99 = vsel %vm98, %v91, %v95
    %v100 = vand.u32 2147483647, %v90
    %vm101 = vcmp.eq.f32.partialorder %v100, 8.507059e+37
    %v102 = vand.u32 %v90, 2147483648
    %v103 = vor.u32 1.1754944e-38, %v102
    %v104 = vsel %vm101, %v103, %v99
    %v105 = vmul.f32 1.0, %v104
    %v106 = vmul.f32 %v66, %v105
    %v107 = vmul.f32 %v67, %v105
    %108 = vst [vmem:[#allocation7] sm:$0xff] %v106
    %109 = vst [vmem:[#allocation7 + $0x8] sm:$0xff] %v107
    %v110 = vld [vmem:[#allocation5] sm:$0x1]
    %v111 = vld [vmem:[%s2] sm:$0x1]
    %v112 = vmul.f32 %v110, 0.9
    %v113 = vmul.f32 %v65, 0.1
    %v114 = vadd.f32 %v112, %v113
    %115 = vst [vmem:[#allocation8] sm:$0x1] %v114
    %v116 = vmul.f32 %v111, 0.9
    %v117 = vmul.f32 %v77, 0.1
    %v118 = vadd.f32 %v116, %v117
    %119 = vst [vmem:[#allocation10] sm:$0x1] %v118
    // Predicated region
    $region22: #{tpu_custom_call.1} parent=1 // pred_check
      _
    $region23: #{tpu_custom_call.1} parent=1 // pred_check_branch
      %121 = sbr.rel (0) target = $region25
    $region24: #{tpu_custom_call.1} parent=1 // pred_region
      %123 = vsyncadd [#allocation4], 0
      %s124 = sshll.u32 [#allocation7], 4
      %s125 = int_to_ptr.vmem [resolvable:$true] %s124
      %s126 = sshll.u32 %s3, 4
      %s127 = int_to_ptr.hbm [resolvable:$true] %s126
      %132 = dma.vmem_to_hbm [thread:$0]  %s125, 256, %s127, [#allocation4], 128, 128, 8
    $region25: #{tpu_custom_call.1} parent=1 // pred_fallthru
      _
    // Predicated region
    $region26: #{tpu_custom_call.1} parent=1 // pred_check
      _
    $region27: #{tpu_custom_call.1} parent=1 // pred_check_branch
      %134 = sbr.rel (0) target = $region29
    $region28: #{tpu_custom_call.1} parent=1 // pred_region
      %136 = vsyncadd [#allocation9], 0
      %s138 = sshll.u32 [#allocation8], 4
      %s139 = int_to_ptr.vmem [resolvable:$true] %s138
      %s140 = sshll.u32 %s4, 4
      %s141 = int_to_ptr.hbm [resolvable:$true] %s140
      %143 = dma.vmem_to_hbm [thread:$0]  %s139, 16, %s141, [#allocation9]
    $region29: #{tpu_custom_call.1} parent=1 // pred_fallthru
      _
    // Predicated region
    $region30: #{tpu_custom_call.1} parent=1 // pred_check
      _
    $region31: #{tpu_custom_call.1} parent=1 // pred_check_branch
      %145 = sbr.rel (0) target = $region33
    $region32: #{tpu_custom_call.1} parent=1 // pred_region
      %147 = vsyncadd [#allocation9], 0
      %s149 = sshll.u32 [#allocation10], 4
      %s150 = int_to_ptr.vmem [resolvable:$true] %s149
      %s151 = sshll.u32 %s5, 4
      %s152 = int_to_ptr.hbm [resolvable:$true] %s151
      %154 = dma.vmem_to_hbm [thread:$0]  %s150, 16, %s152, [#allocation9]
    $region33: #{tpu_custom_call.1} parent=1 // pred_fallthru
      _
    // Predicated region
    $region34: #{tpu_custom_call.1} parent=1 // pred_check
      _
    $region35: #{tpu_custom_call.1} parent=1 // pred_check_branch
      %156 = sbr.rel (0) target = $region37
    $region36: #{tpu_custom_call.1} parent=1 // pred_region
      %158 = dma.done [#allocation4], 256
    $region37: #{tpu_custom_call.1} parent=1 // pred_fallthru
      _
    // Predicated region
    $region38: #{tpu_custom_call.1} parent=1 // pred_check
      _
    $region39: #{tpu_custom_call.1} parent=1 // pred_check_branch
      %160 = sbr.rel (0) target = $region41
    $region40: #{tpu_custom_call.1} parent=1 // pred_region
      %162 = dma.done [#allocation9], 16
    $region41: #{tpu_custom_call.1} parent=1 // pred_fallthru
      _
    // Predicated region
    $region42: #{tpu_custom_call.1} parent=1 // pred_check
      _
    $region43: #{tpu_custom_call.1} parent=1 // pred_check_branch
      %164 = sbr.rel (0) target = $region45
    $region44: #{tpu_custom_call.1} parent=1 // pred_region
      %166 = dma.done [#allocation9], 16
    $region45: #{tpu_custom_call.1} parent=1 // pred_fallthru
      _
    %167 = vsyncpa [#allocation3], 1
    %168 = vsyncpa [#allocation6], 1
    %169 = vsyncpa [#allocation4], 1
    %170 = vsyncpa [#allocation9], 1

</llo_original>
